<compile_context>
chip_gen: v7x
topology: tpu7x:2x2x1
jax: 0.10.0
libtpu: 0.0.40
codegen_flags: <defaults>
</compile_context>

<pallas_src>
import numpy as np
import jax
import jax.numpy as jnp
from jax.experimental import pallas as pl
from jax.experimental.pallas import tpu as pltpu

# ----------------------- config (consistent with the module) ----------------
SEQ_LEN = 64          # configs.seq_len
PRED_LEN = 16         # configs.pred_len
ENC_IN = 4            # configs.enc_in (n_vars)
BATCH = 2

N_FFT = SEQ_LEN // 8                  # 8
HOP = N_FFT // 4                      # 2
N_FRAME = SEQ_LEN // HOP + 1          # 33
D_SPEC = N_FFT // 2 + 1               # 5
FD = N_FRAME * D_SPEC                 # 165
HALF = N_FFT // 2                     # stft center padding
PADLEN = SEQ_LEN + N_FFT              # padded signal length (72)
MA_KERNEL = 25                        # series_decomp kernel_size
MA_PAD = (MA_KERNEL - 1) // 2

FD_PAD = 256                          # lane-dense padding of the FD axis
OUT_PAD = 128                         # lane-dense padding of the PRED_LEN axis


# ----------------------- one-time host precomputation (float64) -------------
def prepare_constants(params, batch):
    """Compose pad∘decomp∘DFT and iDFT∘OLA∘trim∘projection into dense maps.

    Done once per parameter set / batch size (parameter preprocessing), in
    float64, then cast to float32 for the kernel.
    """
    L, V, B = SEQ_LEN, ENC_IN, batch
    BN = B * V

    # series_decomp moving-average matrix (replicate-edge): trend_row = x @ M.T
    M = np.zeros((L, L), np.float64)
    for t in range(L):
        for d in range(-MA_PAD, MA_PAD + 1):
            s = min(max(t + d, 0), L - 1)
            M[t, s] += 1.0 / MA_KERNEL

    # reflect center-pad map (torch.stft center=True): padded_row = x @ R
    R = np.zeros((L, PADLEN), np.float64)
    for p in range(PADLEN):
        if p < HALF:
            l = HALF - p
        elif p < HALF + L:
            l = p - HALF
        else:
            l = 2 * (L - 1) - (p - HALF)
        R[l, p] = 1.0

    # onesided real DFT (rect window), frame t starts at t*HOP
    k = np.arange(N_FFT)[:, None].astype(np.float64)
    f = np.arange(D_SPEC)[None, :].astype(np.float64)
    ang = 2.0 * np.pi * k * f / N_FFT                 # (N_FFT, D_SPEC)
    Cr, Ci = np.cos(ang), -np.sin(ang)
    Wr = np.zeros((PADLEN, FD), np.float64)
    Wi = np.zeros((PADLEN, FD), np.float64)
    for t in range(N_FRAME):
        Wr[t * HOP:t * HOP + N_FFT, t * D_SPEC:(t + 1) * D_SPEC] = Cr
        Wi[t * HOP:t * HOP + N_FFT, t * D_SPEC:(t + 1) * D_SPEC] = Ci

    # inverse rfft + overlap-add + window-envelope normalization + center trim
    w = np.full((D_SPEC,), 2.0)
    w[0] = 1.0
    if N_FFT % 2 == 0:
        w[-1] = 1.0
    Er = (w[:, None] * np.cos(ang.T)) / N_FFT          # (D_SPEC, N_FFT)
    Ei = (w[:, None] * np.sin(ang.T)) / N_FFT
    env = np.zeros((PADLEN,), np.float64)
    for t in range(N_FRAME):
        env[t * HOP:t * HOP + N_FFT] += 1.0            # rect window ** 2
    Ar = np.zeros((FD, L), np.float64)
    Ai = np.zeros((FD, L), np.float64)
    for t in range(N_FRAME):
        for l in range(L):
            kk = l + HALF - t * HOP
            if 0 <= kk < N_FFT:
                Ar[t * D_SPEC:(t + 1) * D_SPEC, l] = Er[:, kk] / env[l + HALF]
                Ai[t * D_SPEC:(t + 1) * D_SPEC, l] = Ei[:, kk] / env[l + HALF]

    # ---- compose forward maps: normalized x (row) -> padded specs ----------
    # spec layout (lanes): [ seasonal_re | trend_re | seasonal_im | trend_im ]
    RWr, RWi = R @ Wr, R @ Wi                          # (L, FD)
    S = (np.eye(L) - M).T                              # seasonal = x @ S
    T = M.T                                            # trend    = x @ T
    F_sr, F_si = S @ RWr, S @ RWi
    F_tr, F_ti = T @ RWr, T @ RWi

    def pad_cols(A):                                   # (L, FD) -> (L, FD_PAD)
        out = np.zeros((A.shape[0], FD_PAD), np.float64)
        out[:, :FD] = A
        return out

    FWD = np.concatenate([pad_cols(F_sr), pad_cols(F_tr),
                          pad_cols(F_si), pad_cols(F_ti)], axis=1)  # (L, 4*FD_PAD)

    # ---- compose (de-duplicated + fused) inverse map with the projection ----
    #   y = z_r_sum @ (Ar@Wp)  -  z_i_sum @ (Ai@Wp)  + bp
    #     = [z_r_sum | z_i_sum] @ [Ar@Wp ; -(Ai@Wp)] + bp
    Wp = np.asarray(params["Wp"], np.float64)          # (L, PRED_LEN)
    bp = np.asarray(params["bp"], np.float64)          # (PRED_LEN,)
    ArWp, AiWp = Ar @ Wp, Ai @ Wp                      # (FD, PRED_LEN)

    def pad_inv(A):                                    # (FD, P) -> (FD_PAD, OUT_PAD)
        out = np.zeros((FD_PAD, OUT_PAD), np.float64)
        out[:FD, :PRED_LEN] = A
        return out

    INV = np.concatenate([pad_inv(ArWp), pad_inv(-AiWp)], axis=0)  # (2*FD_PAD, OUT_PAD)

    bp_pad = np.zeros((1, OUT_PAD), np.float64)
    bp_pad[0, :PRED_LEN] = bp

    # ---- TFB diagonals ('bdmn,dmnn' / 'bdmn,mnn' == diag over last 2 axes) ---
    # Single Y slab laid out to match the spec layout above:
    #   [ yr_seasonal | yr_trend | yi_seasonal | yi_trend ]
    yr_s = np.diagonal(np.asarray(params["tfb_s_r"], np.float64),
                       axis1=-2, axis2=-1).reshape(V, FD)
    yi_s = np.diagonal(np.asarray(params["tfb_s_i"], np.float64),
                       axis1=-2, axis2=-1).reshape(V, FD)
    yr_t = np.diagonal(np.asarray(params["tfb_t_r"], np.float64),
                       axis1=-2, axis2=-1).reshape(FD)
    yi_t = np.diagonal(np.asarray(params["tfb_t_i"], np.float64),
                       axis1=-2, axis2=-1).reshape(FD)

    Y = np.zeros((BN, 4 * FD_PAD), np.float64)
    Y[:, 0 * FD_PAD:0 * FD_PAD + FD] = np.tile(yr_s, (B, 1))   # row b*V+v -> var v
    Y[:, 1 * FD_PAD:1 * FD_PAD + FD] = yr_t[None, :]           # trend TFB shared
    Y[:, 2 * FD_PAD:2 * FD_PAD + FD] = np.tile(yi_s, (B, 1))
    Y[:, 3 * FD_PAD:3 * FD_PAD + FD] = yi_t[None, :]

    # NOTE: constants are kept float32 (not bf16) so the composed DFT/OLA maps
    # keep enough mantissa to pass the 1e-3 check against the f32 reference.
    return {name: jnp.asarray(v, jnp.float32) for name, v in dict(
        FWD=FWD, INV=INV, bp=bp_pad, Y=Y).items()}


# ----------------------- the single fused Pallas kernel ---------------------
def _tfdnet_kernel(x_ref, fwd_ref, y_ref, inv_ref, bp_ref, out_ref):
    x = x_ref[...]                                     # (BN, L), L in lanes
    L = x.shape[1]

    # instance normalization (per series, lane reduction); torch.var unbiased
    mean = jnp.mean(x, axis=1, keepdims=True)          # (BN, 1)
    xc = x - mean
    var = jnp.sum(xc * xc, axis=1, keepdims=True) / (L - 1)
    std = jnp.sqrt(var + 1e-5)
    xn = xc / std

    # fused decomp + reflect-pad + STFT: one matmul produces
    # [spec_seasonal_re | spec_trend_re | spec_seasonal_im | spec_trend_im]
    spec = jnp.dot(xn, fwd_ref[...], preferred_element_type=jnp.float32)

    # TFB complex diagonal mixing:  r = spec_r*yr - spec_i*yi,  q = r - 1j*r
    sy = spec * y_ref[...]                             # [sr*yr | si*yi]
    r = sy[:, :2 * FD_PAD] - sy[:, 2 * FD_PAD:]        # (BN, 2*FD_PAD)
    spec_r = spec[:, :2 * FD_PAD]
    spec_i = spec[:, 2 * FD_PAD:]
    z_r = spec_r + r                                   # [seasonal | trend] real
    z_i = spec_i - r                                   # [seasonal | trend] imag

    # de-dup: sum seasonal + trend halves (128-aligned lane offsets, free VPU
    # adds) so the inverse map is a single (2*FD_PAD, OUT_PAD) matrix.
    z_r_sum = z_r[:, :FD_PAD] + z_r[:, FD_PAD:]
    z_i_sum = z_i[:, :FD_PAD] + z_i[:, FD_PAD:]
    z = jnp.concatenate([z_r_sum, z_i_sum], axis=1)    # (BN, 2*FD_PAD)

    # fused ISTFT + overlap-add + trim + Linear projection (single matmul,
    # imag part carries the minus sign inside INV), then de-normalize.
    y = jnp.dot(z, inv_ref[...], preferred_element_type=jnp.float32) + bp_ref[...]
    out_ref[...] = y * std + mean                      # (BN, OUT_PAD), lane-dense


def tfdnet_forward(x_enc, consts):
    B, L, V = x_enc.shape
    BN = B * V
    # single host-side layout op: (B, L, V) -> (B*V, L) with L in lanes
    x_rows = jnp.transpose(x_enc, (0, 2, 1)).reshape(BN, L)

    # grid-less call: whole arrays live in VMEM once, no double buffering.
    vmem = pl.BlockSpec(memory_space=pltpu.MemorySpace.VMEM)

    y = pl.pallas_call(
        _tfdnet_kernel,
        out_shape=jax.ShapeDtypeStruct((BN, OUT_PAD), jnp.float32),
        in_specs=[vmem, vmem, vmem, vmem, vmem],
        out_specs=vmem,
        compiler_params=pltpu.CompilerParams(vmem_limit_bytes=32 * 1024 * 1024),
    )(x_rows, consts["FWD"], consts["Y"], consts["INV"], consts["bp"])

    y = y[:, :PRED_LEN].reshape(B, V, PRED_LEN)
    return jnp.transpose(y, (0, 2, 1))                 # (B, PRED_LEN, V)


# ----------------------- pure-JAX reference (uses jnp.fft) ------------------
def reference_forward(x_enc, params):
    B, L, V = x_enc.shape
    BN = B * V
    mean = jnp.mean(x_enc, axis=1, keepdims=True)
    var = jnp.var(x_enc, axis=1, ddof=1, keepdims=True)
    std = jnp.sqrt(var + 1e-5)
    xn = (x_enc - mean) / std

    front = jnp.repeat(xn[:, :1, :], MA_PAD, axis=1)
    end = jnp.repeat(xn[:, -1:, :], MA_PAD, axis=1)
    xp = jnp.concatenate([front, xn, end], axis=1)
    trend = jnp.stack([jnp.mean(xp[:, t:t + MA_KERNEL, :], axis=1)
                       for t in range(L)], axis=1)
    seasonal = xn - trend

    def enc(sig, yr_diag, yi_diag):
        s = jnp.transpose(sig, (0, 2, 1)).reshape(BN, L)
        sp = jnp.pad(s, ((0, 0), (HALF, HALF)), mode="reflect")
        frames = jnp.stack([sp[:, t * HOP:t * HOP + N_FFT]
                            for t in range(N_FRAME)], axis=1)        # (BN,F,N)
        spec = jnp.fft.rfft(frames, axis=-1)                         # (BN,F,D)
        sr, si = jnp.real(spec), jnp.imag(spec)
        r = sr * yr_diag - si * yi_diag
        z = (sr + r) + 1j * (si - r)
        fr = jnp.fft.irfft(z, n=N_FFT, axis=-1)                      # (BN,F,N)
        outp = jnp.zeros((BN, PADLEN))
        env = jnp.zeros((PADLEN,))
        for t in range(N_FRAME):
            outp = outp.at[:, t * HOP:t * HOP + N_FFT].add(fr[:, t, :])
            env = env.at[t * HOP:t * HOP + N_FFT].add(1.0)
        return outp[:, HALF:HALF + L] / env[HALF:HALF + L]

    yr_s = jnp.diagonal(params["tfb_s_r"], axis1=-2, axis2=-1)
    yi_s = jnp.diagonal(params["tfb_s_i"], axis1=-2, axis2=-1)
    yr_t = jnp.diagonal(params["tfb_t_r"], axis1=-2, axis2=-1)
    yi_t = jnp.diagonal(params["tfb_t_i"], axis1=-2, axis2=-1)
    yr_s3 = jnp.broadcast_to(yr_s[None], (B, V, N_FRAME, D_SPEC)).reshape(BN, N_FRAME, D_SPEC)
    yi_s3 = jnp.broadcast_to(yi_s[None], (B, V, N_FRAME, D_SPEC)).reshape(BN, N_FRAME, D_SPEC)
    yr_t3 = jnp.broadcast_to(yr_t[None, None], (B, V, N_FRAME, D_SPEC)).reshape(BN, N_FRAME, D_SPEC)
    yi_t3 = jnp.broadcast_to(yi_t[None, None], (B, V, N_FRAME, D_SPEC)).reshape(BN, N_FRAME, D_SPEC)

    tot = enc(seasonal, yr_s3, yi_s3) + enc(trend, yr_t3, yi_t3)     # (BN, L)
    y = tot @ params["Wp"] + params["bp"]
    out = jnp.transpose(y.reshape(B, V, PRED_LEN), (0, 2, 1))        # (B, Pr, V)
    return out * std + mean


# ----------------------- main ------------------------------------------------
if __name__ == "__main__":
    key = jax.random.PRNGKey(0)
    ks = jax.random.split(key, 8)
    params = {
        "tfb_s_r": jax.random.normal(ks[0], (ENC_IN, N_FRAME, D_SPEC, D_SPEC), jnp.float32),
        "tfb_s_i": jax.random.normal(ks[1], (ENC_IN, N_FRAME, D_SPEC, D_SPEC), jnp.float32),
        "tfb_t_r": jax.random.normal(ks[2], (N_FRAME, D_SPEC, D_SPEC), jnp.float32),
        "tfb_t_i": jax.random.normal(ks[3], (N_FRAME, D_SPEC, D_SPEC), jnp.float32),
        "Wp": jax.random.uniform(ks[4], (SEQ_LEN, PRED_LEN), jnp.float32,
                                 -1.0 / np.sqrt(SEQ_LEN), 1.0 / np.sqrt(SEQ_LEN)),
        "bp": jax.random.uniform(ks[5], (PRED_LEN,), jnp.float32,
                                 -1.0 / np.sqrt(SEQ_LEN), 1.0 / np.sqrt(SEQ_LEN)),
    }

    # one-time parameter preprocessing (host, float64)
    consts = prepare_constants(params, BATCH)

    x_enc = jax.random.normal(ks[6], (BATCH, SEQ_LEN, ENC_IN), jnp.float32)

    out = tfdnet_forward(x_enc, consts)
    out = jax.block_until_ready(out)
    assert out.shape == (BATCH, PRED_LEN, ENC_IN)

    ref = jax.block_until_ready(reference_forward(x_enc, params))
    np.testing.assert_allclose(np.asarray(out), np.asarray(ref),
                               rtol=1e-3, atol=1e-3)
    print("KERNEL_OK")
</pallas_src>

<mosaic_0001>
module attributes {stable_mosaic.version = 11 : i64} {
  func.func @_tfdnet_kernel(%arg0: memref<8x64xf32, #tpu.memory_space<vmem>>, %arg1: memref<64x1024xf32, #tpu.memory_space<vmem>>, %arg2: memref<8x1024xf32, #tpu.memory_space<vmem>>, %arg3: memref<512x128xf32, #tpu.memory_space<vmem>>, %arg4: memref<1x128xf32, #tpu.memory_space<vmem>>, %arg5: memref<8x128xf32, #tpu.memory_space<vmem>>) attributes {dimension_semantics = [], scalar_prefetch = 0 : i64, scratch_operands = 0 : i64, tpu.core_type = #tpu.core_type<tc>} {
    %c0 = arith.constant 0 : index
    %c0_0 = arith.constant 0 : index
    %0 = vector.load %arg0[%c0, %c0_0] : memref<8x64xf32, #tpu.memory_space<vmem>>, vector<8x64xf32>
    %cst = arith.constant dense<0.000000e+00> : vector<8xf32>
    %1 = vector.multi_reduction <add>, %0, %cst [1] : vector<8x64xf32> to vector<8xf32>
    %2 = vector.shape_cast %1 : vector<8xf32> to vector<8x1xf32>
    %cst_1 = arith.constant 6.400000e+01 : f32
    %3 = vector.broadcast %cst_1 : f32 to vector<8x1xf32>
    %4 = arith.divf %2, %3 : vector<8x1xf32>
    %5 = vector.broadcast %4 : vector<8x1xf32> to vector<8x64xf32>
    %6 = arith.subf %0, %5 : vector<8x64xf32>
    %7 = arith.mulf %6, %6 : vector<8x64xf32>
    %cst_2 = arith.constant dense<0.000000e+00> : vector<8xf32>
    %8 = vector.multi_reduction <add>, %7, %cst_2 [1] : vector<8x64xf32> to vector<8xf32>
    %9 = vector.shape_cast %8 : vector<8xf32> to vector<8x1xf32>
    %cst_3 = arith.constant 6.300000e+01 : f32
    %10 = vector.broadcast %cst_3 : f32 to vector<8x1xf32>
    %11 = arith.divf %9, %10 : vector<8x1xf32>
    %cst_4 = arith.constant 9.99999974E-6 : f32
    %12 = vector.broadcast %cst_4 : f32 to vector<8x1xf32>
    %13 = arith.addf %11, %12 : vector<8x1xf32>
    %14 = math.sqrt %13 : vector<8x1xf32>
    %15 = vector.broadcast %14 : vector<8x1xf32> to vector<8x64xf32>
    %16 = arith.divf %6, %15 : vector<8x64xf32>
    %c0_5 = arith.constant 0 : index
    %c0_6 = arith.constant 0 : index
    %17 = vector.load %arg1[%c0_5, %c0_6] : memref<64x1024xf32, #tpu.memory_space<vmem>>, vector<64x1024xf32>
    %cst_7 = arith.constant dense<0.000000e+00> : vector<8x1024xf32>
    %18 = tpu.matmul %16, %17, %cst_7 {dimension_numbers = #tpu.dot_dimension_numbers<[1], [0], [0], [1], [0, 0, 1, 1], [], []>} : vector<8x64xf32>, vector<64x1024xf32>, vector<8x1024xf32> -> vector<8x1024xf32>
    %c0_8 = arith.constant 0 : index
    %c0_9 = arith.constant 0 : index
    %19 = vector.load %arg2[%c0_8, %c0_9] : memref<8x1024xf32, #tpu.memory_space<vmem>>, vector<8x1024xf32>
    %20 = arith.mulf %18, %19 : vector<8x1024xf32>
    %21 = vector.extract_strided_slice %20 {offsets = [0, 0], sizes = [8, 512], strides = [1, 1]} : vector<8x1024xf32> to vector<8x512xf32>
    %22 = vector.extract_strided_slice %20 {offsets = [0, 512], sizes = [8, 512], strides = [1, 1]} : vector<8x1024xf32> to vector<8x512xf32>
    %23 = arith.subf %21, %22 : vector<8x512xf32>
    %24 = vector.extract_strided_slice %18 {offsets = [0, 0], sizes = [8, 512], strides = [1, 1]} : vector<8x1024xf32> to vector<8x512xf32>
    %25 = vector.extract_strided_slice %18 {offsets = [0, 512], sizes = [8, 512], strides = [1, 1]} : vector<8x1024xf32> to vector<8x512xf32>
    %26 = arith.addf %24, %23 : vector<8x512xf32>
    %27 = arith.subf %25, %23 : vector<8x512xf32>
    %28 = vector.extract_strided_slice %26 {offsets = [0, 0], sizes = [8, 256], strides = [1, 1]} : vector<8x512xf32> to vector<8x256xf32>
    %29 = vector.extract_strided_slice %26 {offsets = [0, 256], sizes = [8, 256], strides = [1, 1]} : vector<8x512xf32> to vector<8x256xf32>
    %30 = arith.addf %28, %29 : vector<8x256xf32>
    %31 = vector.extract_strided_slice %27 {offsets = [0, 0], sizes = [8, 256], strides = [1, 1]} : vector<8x512xf32> to vector<8x256xf32>
    %32 = vector.extract_strided_slice %27 {offsets = [0, 256], sizes = [8, 256], strides = [1, 1]} : vector<8x512xf32> to vector<8x256xf32>
    %33 = arith.addf %31, %32 : vector<8x256xf32>
    %34 = tpu.concatenate %30, %33 in 1 : vector<8x256xf32>, vector<8x256xf32> -> vector<8x512xf32>
    %c0_10 = arith.constant 0 : index
    %c0_11 = arith.constant 0 : index
    %35 = vector.load %arg3[%c0_10, %c0_11] : memref<512x128xf32, #tpu.memory_space<vmem>>, vector<512x128xf32>
    %cst_12 = arith.constant dense<0.000000e+00> : vector<8x128xf32>
    %36 = tpu.matmul %34, %35, %cst_12 {dimension_numbers = #tpu.dot_dimension_numbers<[1], [0], [0], [1], [0, 0, 1, 1], [], []>} : vector<8x512xf32>, vector<512x128xf32>, vector<8x128xf32> -> vector<8x128xf32>
    %c0_13 = arith.constant 0 : index
    %c0_14 = arith.constant 0 : index
    %37 = vector.load %arg4[%c0_13, %c0_14] : memref<1x128xf32, #tpu.memory_space<vmem>>, vector<1x128xf32>
    %38 = vector.broadcast %37 : vector<1x128xf32> to vector<8x128xf32>
    %39 = arith.addf %36, %38 : vector<8x128xf32>
    %40 = vector.broadcast %14 : vector<8x1xf32> to vector<8x128xf32>
    %41 = arith.mulf %39, %40 : vector<8x128xf32>
    %42 = vector.broadcast %4 : vector<8x1xf32> to vector<8x128xf32>
    %43 = arith.addf %41, %42 : vector<8x128xf32>
    %c0_15 = arith.constant 0 : index
    %c0_16 = arith.constant 0 : index
    %44 = vector.load %arg5[%c0_15, %c0_16] : memref<8x128xf32, #tpu.memory_space<vmem>>, vector<8x128xf32>
    tpu.vector_store %arg5[%c0_15, %c0_16], %43 {strides = array<i32>} : memref<8x128xf32, #tpu.memory_space<vmem>>, vector<8x128xf32>,
    return
  }
}

</mosaic_0001>

<llo_original>
// kernel: tpu_custom_call.1
$region0: #{tpu_custom_call.1}
  #allocation0 [shape = 'u32[]', space=smem, size = 0x4, offset = 0x4, fixed_abs, tag = 'smem constant byte address 0x4 - core index']
  #allocation1 [shape = 'u32[144,128]{1,0:T(1,128)}', space=vmem, size = 0x12000, scoped, tag = 'internal scratch']
  %s0 = inlined_call_operand.hbm [shape: f32[8,64], index: 0, kind: input, shape index: {}]
  %s1 = inlined_call_operand.hbm [shape: f32[64,1024], index: 1, kind: input, shape index: {}]
  %s2 = inlined_call_operand.hbm [shape: f32[8,1024], index: 2, kind: input, shape index: {}]
  %s3 = inlined_call_operand.hbm [shape: f32[512,128], index: 3, kind: input, shape index: {}]
  %s4 = inlined_call_operand.vmem [shape: f32[1,128], index: 4, kind: input, shape index: {}]
  %s5 = inlined_call_operand.hbm [shape: f32[8,128], index: 5, kind: output, shape index: {}]
  %s6 = sld [smem:[#allocation0]]
  $region46: #{tpu_custom_call.1} parent=0
    _
  %s8 = ssub.s32 1, %s6
  %s9 = scalar_select 0, %s8, %s6
  $region1: #{tpu_custom_call.1} parent=0
    #allocation2 [shape = 'u8[4096]{0}', space=vmem, size = 0x1000, scoped, tag = 'input window, operand 0, single buffered']
    #allocation3 [shape = 's32[1]{0}', space=sflag, size = 0x4, scoped, tag = 'scoped memory for tpu_custom_call.1']
    #allocation4 [shape = 's32[1]{0}', space=sflag, size = 0x4, scoped, tag = 'scoped memory for tpu_custom_call.1']
    #allocation5 [shape = 'u8[262144]{0}', space=vmem, size = 0x40000, scoped, tag = 'input window, operand 1, single buffered']
    #allocation6 [shape = 's32[1]{0}', space=sflag, size = 0x4, scoped, tag = 'scoped memory for tpu_custom_call.1']
    #allocation7 [shape = 'u8[32768]{0}', space=vmem, size = 0x8000, scoped, tag = 'input window, operand 2, single buffered']
    #allocation8 [shape = 'u8[262144]{0}', space=vmem, size = 0x40000, scoped, tag = 'input window, operand 3, single buffered']
    #allocation9 [shape = 's32[1]{0}', space=sflag, size = 0x4, scoped, tag = 'scoped memory for tpu_custom_call.1']
    #allocation10 [shape = 'u8[4096]{0}', space=vmem, size = 0x1000, scoped, tag = 'output window, operand 0, single buffered']
    %10 = vsyncpa [#allocation3], 0
    %11 = vsyncpa [#allocation6], 0
    %12 = vsyncpa [#allocation9], 0
    %13 = vsyncpa [#allocation4], 0
    // Predicated region
    $region2: #{tpu_custom_call.1} parent=1 // pred_check
      _
    $region3: #{tpu_custom_call.1} parent=1 // pred_check_branch
      %15 = sbr.rel (0) target = $region5
    $region4: #{tpu_custom_call.1} parent=1 // pred_region
      %s17 = ssub.s32 128, 128
      %18 = vsyncadd [#allocation3], %s17
      %s20 = sshll.u32 [#allocation2], 4
      %s21 = int_to_ptr.vmem [resolvable:$true] %s20
      %23 = dma.hbm_to_vmem [thread:$0]  %s0, 128, %s21, [#allocation3]
    $region5: #{tpu_custom_call.1} parent=1 // pred_fallthru
      _
    // Predicated region
    $region6: #{tpu_custom_call.1} parent=1 // pred_check
      _
    $region7: #{tpu_custom_call.1} parent=1 // pred_check_branch
      %25 = sbr.rel (0) target = $region9
    $region8: #{tpu_custom_call.1} parent=1 // pred_region
      %s27 = ssub.s32 8192, 8192
      %28 = vsyncadd [#allocation6], %s27
      %s29 = sshll.u32 [#allocation5], 4
      %s30 = int_to_ptr.vmem [resolvable:$true] %s29
      %35 = dma.hbm_to_vmem [thread:$0]  %s1, 8192, %s30, [#allocation6], 1024, 1024, 64
    $region9: #{tpu_custom_call.1} parent=1 // pred_fallthru
      _
    // Predicated region
    $region10: #{tpu_custom_call.1} parent=1 // pred_check
      _
    $region11: #{tpu_custom_call.1} parent=1 // pred_check_branch
      %37 = sbr.rel (0) target = $region13
    $region12: #{tpu_custom_call.1} parent=1 // pred_region
      %s39 = ssub.s32 1024, 1024
      %40 = vsyncadd [#allocation6], %s39
      %s42 = sshll.u32 [#allocation7], 4
      %s43 = int_to_ptr.vmem [resolvable:$true] %s42
      %45 = dma.hbm_to_vmem [thread:$0]  %s2, 1024, %s43, [#allocation6]
    $region13: #{tpu_custom_call.1} parent=1 // pred_fallthru
      _
    // Predicated region
    $region14: #{tpu_custom_call.1} parent=1 // pred_check
      _
    $region15: #{tpu_custom_call.1} parent=1 // pred_check_branch
      %47 = sbr.rel (0) target = $region17
    $region16: #{tpu_custom_call.1} parent=1 // pred_region
      %s49 = ssub.s32 8192, 8192
      %50 = vsyncadd [#allocation9], %s49
      %s51 = sshll.u32 [#allocation8], 4
      %s52 = int_to_ptr.vmem [resolvable:$true] %s51
      %57 = dma.hbm_to_vmem [thread:$0]  %s3, 8192, %s52, [#allocation9], 128, 128, 8
    $region17: #{tpu_custom_call.1} parent=1 // pred_fallthru
      _
    // Predicated region
    $region18: #{tpu_custom_call.1} parent=1 // pred_check
      _
    $region19: #{tpu_custom_call.1} parent=1 // pred_check_branch
      %59 = sbr.rel (0) target = $region21
    $region20: #{tpu_custom_call.1} parent=1 // pred_region
      _
    $region21: #{tpu_custom_call.1} parent=1 // pred_fallthru
      _
    // Predicated region
    $region22: #{tpu_custom_call.1} parent=1 // pred_check
      _
    $region23: #{tpu_custom_call.1} parent=1 // pred_check_branch
      %61 = sbr.rel (0) target = $region25
    $region24: #{tpu_custom_call.1} parent=1 // pred_region
      %62 = dma.done [#allocation3], 128
    $region25: #{tpu_custom_call.1} parent=1 // pred_fallthru
      _
    // Predicated region
    $region26: #{tpu_custom_call.1} parent=1 // pred_check
      _
    $region27: #{tpu_custom_call.1} parent=1 // pred_check_branch
      %64 = sbr.rel (0) target = $region29
    $region28: #{tpu_custom_call.1} parent=1 // pred_region
      %65 = dma.done [#allocation6], 8192
    $region29: #{tpu_custom_call.1} parent=1 // pred_fallthru
      _
    // Predicated region
    $region30: #{tpu_custom_call.1} parent=1 // pred_check
      _
    $region31: #{tpu_custom_call.1} parent=1 // pred_check_branch
      %67 = sbr.rel (0) target = $region33
    $region32: #{tpu_custom_call.1} parent=1 // pred_region
      %68 = dma.done [#allocation6], 1024
    $region33: #{tpu_custom_call.1} parent=1 // pred_fallthru
      _
    // Predicated region
    $region34: #{tpu_custom_call.1} parent=1 // pred_check
      _
    $region35: #{tpu_custom_call.1} parent=1 // pred_check_branch
      %70 = sbr.rel (0) target = $region37
    $region36: #{tpu_custom_call.1} parent=1 // pred_region
      %71 = dma.done [#allocation9], 8192
    $region37: #{tpu_custom_call.1} parent=1 // pred_fallthru
      _
    %v72 = vld [vmem:[#allocation2] sm:$0xff]
    %vm73 = vcmask 523264
    %v74 = vsel %vm73, %v72, 0.0
    %75 = vadd.xlane.f32.xlu0 %v74
    %v76 = vpop.xlane.xlu0 %75
    %v77 = vrcp.pop 64.0
    %v78 = vmul.f32 %v76, %v77
    %v79 = vsub.f32 %v72, %v78
    %v80 = vmul.f32 %v79, %v79
    %v81 = vsel %vm73, %v80, 0.0
    %82 = vadd.xlane.f32.xlu0 %v81
    %v83 = vpop.xlane.xlu0 %82
    %v84 = vrcp.pop 63.0
    %v85 = vmul.f32 %v83, %v84
    %v86 = vadd.f32 %v85, 1e-05
    %v87 = vrsqrt.pop %v86
    %v88 = vmul.f32 %v86, %v87
    %vm89 = vcmp.eq.f32.partialorder %v86, inf
    %v90 = vsel %vm89, %v86, %v88
    %vm91 = vcmp.eq.f32.partialorder %v86, 0.0
    %v92 = vand.u32 %v86, 2147483648
    %v93 = vsel %vm91, %v92, %v90
    %v94 = vrcp.pop %v93
    %v95 = vmul.f32 %v79, %v94
    %v96 = vld [vmem:[#allocation5] sm:$0xff]
    %v97 = vld [vmem:[#allocation5 + $0x8] sm:$0xff]
    %v98 = vld [vmem:[#allocation5 + $0x10] sm:$0xff]
    %v99 = vld [vmem:[#allocation5 + $0x18] sm:$0xff]
    %v100 = vld [vmem:[#allocation5 + $0x20] sm:$0xff]
    %v101 = vld [vmem:[#allocation5 + $0x28] sm:$0xff]
    %v102 = vld [vmem:[#allocation5 + $0x30] sm:$0xff]
    %v103 = vld [vmem:[#allocation5 + $0x38] sm:$0xff]
    %v104 = vld [vmem:[#allocation5 + $0x40] sm:$0xff]
    %v105 = vld [vmem:[#allocation5 + $0x48] sm:$0xff]
    %v106 = vld [vmem:[#allocation5 + $0x50] sm:$0xff]
    %v107 = vld [vmem:[#allocation5 + $0x58] sm:$0xff]
    %v108 = vld [vmem:[#allocation5 + $0x60] sm:$0xff]
    %v109 = vld [vmem:[#allocation5 + $0x68] sm:$0xff]
    %v110 = vld [vmem:[#allocation5 + $0x70] sm:$0xff]
    %v111 = vld [vmem:[#allocation5 + $0x78] sm:$0xff]
    %v112 = vld [vmem:[#allocation5 + $0x80] sm:$0xff]
    %v113 = vld [vmem:[#allocation5 + $0x88] sm:$0xff]
    %v114 = vld [vmem:[#allocation5 + $0x90] sm:$0xff]
    %v115 = vld [vmem:[#allocation5 + $0x98] sm:$0xff]
    %v116 = vld [vmem:[#allocation5 + $0xa0] sm:$0xff]
    %v117 = vld [vmem:[#allocation5 + $0xa8] sm:$0xff]
    %v118 = vld [vmem:[#allocation5 + $0xb0] sm:$0xff]
    %v119 = vld [vmem:[#allocation5 + $0xb8] sm:$0xff]
    %v120 = vld [vmem:[#allocation5 + $0xc0] sm:$0xff]
    %v121 = vld [vmem:[#allocation5 + $0xc8] sm:$0xff]
    %v122 = vld [vmem:[#allocation5 + $0xd0] sm:$0xff]
    %v123 = vld [vmem:[#allocation5 + $0xd8] sm:$0xff]
    %v124 = vld [vmem:[#allocation5 + $0xe0] sm:$0xff]
    %v125 = vld [vmem:[#allocation5 + $0xe8] sm:$0xff]
    %v126 = vld [vmem:[#allocation5 + $0xf0] sm:$0xff]
    %v127 = vld [vmem:[#allocation5 + $0xf8] sm:$0xff]
    %v128 = vld [vmem:[#allocation5 + $0x100] sm:$0xff]
    %v129 = vld [vmem:[#allocation5 + $0x108] sm:$0xff]
    %v130 = vld [vmem:[#allocation5 + $0x110] sm:$0xff]
    %v131 = vld [vmem:[#allocation5 + $0x118] sm:$0xff]
    %v132 = vld [vmem:[#allocation5 + $0x120] sm:$0xff]
    %v133 = vld [vmem:[#allocation5 + $0x128] sm:$0xff]
    %v134 = vld [vmem:[#allocation5 + $0x130] sm:$0xff]
    %v135 = vld [vmem:[#allocation5 + $0x138] sm:$0xff]
    %v136 = vld [vmem:[#allocation5 + $0x140] sm:$0xff]
    %v137 = vld [vmem:[#allocation5 + $0x148] sm:$0xff]
    %v138 = vld [vmem:[#allocation5 + $0x150] sm:$0xff]
    %v139 = vld [vmem:[#allocation5 + $0x158] sm:$0xff]
    %v140 = vld [vmem:[#allocation5 + $0x160] sm:$0xff]
    %v141 = vld [vmem:[#allocation5 + $0x168] sm:$0xff]
    %v142 = vld [vmem:[#allocation5 + $0x170] sm:$0xff]
    %v143 = vld [vmem:[#allocation5 + $0x178] sm:$0xff]
    %v144 = vld [vmem:[#allocation5 + $0x180] sm:$0xff]
    %v145 = vld [vmem:[#allocation5 + $0x188] sm:$0xff]
    %v146 = vld [vmem:[#allocation5 + $0x190] sm:$0xff]
    %v147 = vld [vmem:[#allocation5 + $0x198] sm:$0xff]
    %v148 = vld [vmem:[#allocation5 + $0x1a0] sm:$0xff]
    %v149 = vld [vmem:[#allocation5 + $0x1a8] sm:$0xff]
    %v150 = vld [vmem:[#allocation5 + $0x1b0] sm:$0xff]
    %v151 = vld [vmem:[#allocation5 + $0x1b8] sm:$0xff]
    %v152 = vld [vmem:[#allocation5 + $0x1c0] sm:$0xff]
    %v153 = vld [vmem:[#allocation5 + $0x1c8] sm:$0xff]
    %v154 = vld [vmem:[#allocation5 + $0x1d0] sm:$0xff]
    %v155 = vld [vmem:[#allocation5 + $0x1d8] sm:$0xff]
    %v156 = vld [vmem:[#allocation5 + $0x1e0] sm:$0xff]
    %v157 = vld [vmem:[#allocation5 + $0x1e8] sm:$0xff]
    %v158 = vld [vmem:[#allocation5 + $0x1f0] sm:$0xff]
    %v159 = vld [vmem:[#allocation5 + $0x1f8] sm:$0xff]
    %v161 = vsel %vm73, %v95, 0
    %163 = vmatprep.subr.mxu0 %v97
    %164 = vmatpush1.msra.mxu0 %v96
    %165 = vmatprep.subr.mxu0 %v105
    %166 = vmatpush1.msra.mxu0 %v104
    %167 = vmatprep.subr.mxu0 %v113
    %168 = vmatpush1.msra.mxu0 %v112
    %169 = vmatprep.subr.mxu0 %v121
    %170 = vmatpush1.msra.mxu0 %v120
    %171 = vmatprep.subr.mxu0 %v129
    %172 = vmatpush1.msra.mxu0 %v128
    %173 = vmatprep.subr.mxu0 %v137
    %174 = vmatpush1.msra.mxu0 %v136
    %175 = vmatprep.subr.mxu0 %v145
    %176 = vmatpush1.msra.mxu0 %v144
    %177 = vmatprep.subr.mxu0 %v153
    %178 = vmatpush1.msra.mxu0 %v152
    %179 = vmatprep.subr.mxu0 0.0
    %180 = vmatpush1.msra.mxu0 0.0
    %181 = vmatprep.subr.mxu0 0.0
    %182 = vmatpush1.msra.mxu0 0.0
    %183 = vmatprep.subr.mxu0 0.0
    %184 = vmatpush1.msra.mxu0 0.0
    %185 = vmatprep.subr.mxu0 0.0
    %186 = vmatpush1.msra.mxu0 0.0
    %187 = vmatprep.subr.mxu0 0.0
    %188 = vmatpush1.msra.mxu0 0.0
    %189 = vmatprep.subr.mxu0 0.0
    %190 = vmatpush1.msra.mxu0 0.0
    %191 = vmatprep.subr.mxu0 0.0
    %192 = vmatpush1.msra.mxu0 0.0
    %193 = vmatprep.subr.mxu0 0.0
    %194 = vmatpush1.msra.mxu0 0.0
    %195 = vmatprep.subr.mxu0 0.0
    %196 = vmatpush1.msra.mxu0 0.0
    %197 = vmatprep.subr.mxu0 0.0
    %198 = vmatpush1.msra.mxu0 0.0
    %199 = vmatprep.subr.mxu0 0.0
    %200 = vmatpush1.msra.mxu0 0.0
    %201 = vmatprep.subr.mxu0 0.0
    %202 = vmatpush1.msra.mxu0 0.0
    %203 = vmatprep.subr.mxu0 0.0
    %204 = vmatpush1.msra.mxu0 0.0
    %205 = vmatprep.subr.mxu0 0.0
    %206 = vmatpush1.msra.mxu0 0.0
    %207 = vmatprep.subr.mxu0 0.0
    %208 = vmatpush1.msra.mxu0 0.0
    %209 = vmatprep.subr.mxu0 0.0
    %210 = vmatpush1.msra.mxu0 0.0
    %211 = vmatprep.subr.mxu0 0.0
    %212 = vmatpush1.msra.mxu0 0.0
    %213 = vmatprep.subr.mxu0 0.0
    %214 = vmatpush1.msra.mxu0 0.0
    %215 = vmatprep.subr.mxu0 0.0
    %216 = vmatpush1.msra.mxu0 0.0
    %217 = vmatprep.subr.mxu0 0.0
    %218 = vmatpush1.msra.mxu0 0.0
    %219 = vmatprep.subr.mxu0 0.0
    %220 = vmatpush1.msra.mxu0 0.0
    %221 = vmatprep.subr.mxu0 0.0
    %222 = vmatpush1.msra.mxu0 0.0
    %223 = vmatprep.subr.mxu0 0.0
    %224 = vmatpush1.msra.mxu0 0.0
    %225 = vmatprep.subr.mxu0 0.0
    %226 = vmatpush1.msra.mxu0 0.0
    %227 = vmatprep.mubr.f32.mxu0 0.0
    %228 = vmatmul.mubr.f32.gmra.mrb[0].mxu0 %v161
    %v229 = vpop.f32.mrb[0].mxu0
    %v230 = vadd.f32 0.0, %v229
    %v231 = vpop.f32.mrb[0].mxu0
    %v232 = vadd.f32 0.0, %v231
    %233 = vdwg.mxu0
    %234 = vmatprep.subr.mxu0 %v99
    %235 = vmatpush1.msra.mxu0 %v98
    %236 = vmatprep.subr.mxu0 %v107
    %237 = vmatpush1.msra.mxu0 %v106
    %238 = vmatprep.subr.mxu0 %v115
    %239 = vmatpush1.msra.mxu0 %v114
    %240 = vmatprep.subr.mxu0 %v123
    %241 = vmatpush1.msra.mxu0 %v122
    %242 = vmatprep.subr.mxu0 %v131
    %243 = vmatpush1.msra.mxu0 %v130
    %244 = vmatprep.subr.mxu0 %v139
    %245 = vmatpush1.msra.mxu0 %v138
    %246 = vmatprep.subr.mxu0 %v147
    %247 = vmatpush1.msra.mxu0 %v146
    %248 = vmatprep.subr.mxu0 %v155
    %249 = vmatpush1.msra.mxu0 %v154
    %250 = vmatprep.subr.mxu0 0.0
    %251 = vmatpush1.msra.mxu0 0.0
    %252 = vmatprep.subr.mxu0 0.0
    %253 = vmatpush1.msra.mxu0 0.0
    %254 = vmatprep.subr.mxu0 0.0
    %255 = vmatpush1.msra.mxu0 0.0
    %256 = vmatprep.subr.mxu0 0.0
    %257 = vmatpush1.msra.mxu0 0.0
    %258 = vmatprep.subr.mxu0 0.0
    %259 = vmatpush1.msra.mxu0 0.0
    %260 = vmatprep.subr.mxu0 0.0
    %261 = vmatpush1.msra.mxu0 0.0
    %262 = vmatprep.subr.mxu0 0.0
    %263 = vmatpush1.msra.mxu0 0.0
    %264 = vmatprep.subr.mxu0 0.0
    %265 = vmatpush1.msra.mxu0 0.0
    %266 = vmatprep.subr.mxu0 0.0
    %267 = vmatpush1.msra.mxu0 0.0
    %268 = vmatprep.subr.mxu0 0.0
    %269 = vmatpush1.msra.mxu0 0.0
    %270 = vmatprep.subr.mxu0 0.0
    %271 = vmatpush1.msra.mxu0 0.0
    %272 = vmatprep.subr.mxu0 0.0
    %273 = vmatpush1.msra.mxu0 0.0
    %274 = vmatprep.subr.mxu0 0.0
    %275 = vmatpush1.msra.mxu0 0.0
    %276 = vmatprep.subr.mxu0 0.0
    %277 = vmatpush1.msra.mxu0 0.0
    %278 = vmatprep.subr.mxu0 0.0
    %279 = vmatpush1.msra.mxu0 0.0
    %280 = vmatprep.subr.mxu0 0.0
    %281 = vmatpush1.msra.mxu0 0.0
    %282 = vmatprep.subr.mxu0 0.0
    %283 = vmatpush1.msra.mxu0 0.0
    %284 = vmatprep.subr.mxu0 0.0
    %285 = vmatpush1.msra.mxu0 0.0
    %286 = vmatprep.subr.mxu0 0.0
    %287 = vmatpush1.msra.mxu0 0.0
    %288 = vmatprep.subr.mxu0 0.0
    %289 = vmatpush1.msra.mxu0 0.0
    %290 = vmatprep.subr.mxu0 0.0
    %291 = vmatpush1.msra.mxu0 0.0
    %292 = vmatprep.subr.mxu0 0.0
    %293 = vmatpush1.msra.mxu0 0.0
    %294 = vmatprep.subr.mxu0 0.0
    %295 = vmatpush1.msra.mxu0 0.0
    %296 = vmatprep.subr.mxu0 0.0
    %297 = vmatpush1.msra.mxu0 0.0
    %298 = vmatprep.mubr.f32.mxu0 0.0
    %299 = vmatmul.mubr.f32.gmra.mrb[0].mxu0 %v161
    %v300 = vpop.f32.mrb[0].mxu0
    %v301 = vadd.f32 0.0, %v300
    %v302 = vpop.f32.mrb[0].mxu0
    %v303 = vadd.f32 0.0, %v302
    %304 = vdwg.mxu0
    %305 = vmatprep.subr.mxu0 %v101
    %306 = vmatpush1.msra.mxu0 %v100
    %307 = vmatprep.subr.mxu0 %v109
    %308 = vmatpush1.msra.mxu0 %v108
    %309 = vmatprep.subr.mxu0 %v117
    %310 = vmatpush1.msra.mxu0 %v116
    %311 = vmatprep.subr.mxu0 %v125
    %312 = vmatpush1.msra.mxu0 %v124
    %313 = vmatprep.subr.mxu0 %v133
    %314 = vmatpush1.msra.mxu0 %v132
    %315 = vmatprep.subr.mxu0 %v141
    %316 = vmatpush1.msra.mxu0 %v140
    %317 = vmatprep.subr.mxu0 %v149
    %318 = vmatpush1.msra.mxu0 %v148
    %319 = vmatprep.subr.mxu0 %v157
    %320 = vmatpush1.msra.mxu0 %v156
    %321 = vmatprep.subr.mxu0 0.0
    %322 = vmatpush1.msra.mxu0 0.0
    %323 = vmatprep.subr.mxu0 0.0
    %324 = vmatpush1.msra.mxu0 0.0
    %325 = vmatprep.subr.mxu0 0.0
    %326 = vmatpush1.msra.mxu0 0.0
    %327 = vmatprep.subr.mxu0 0.0
    %328 = vmatpush1.msra.mxu0 0.0
    %329 = vmatprep.subr.mxu0 0.0
    %330 = vmatpush1.msra.mxu0 0.0
    %331 = vmatprep.subr.mxu0 0.0
    %332 = vmatpush1.msra.mxu0 0.0
    %333 = vmatprep.subr.mxu0 0.0
    %334 = vmatpush1.msra.mxu0 0.0
    %335 = vmatprep.subr.mxu0 0.0
    %336 = vmatpush1.msra.mxu0 0.0
    %337 = vmatprep.subr.mxu0 0.0
    %338 = vmatpush1.msra.mxu0 0.0
    %339 = vmatprep.subr.mxu0 0.0
    %340 = vmatpush1.msra.mxu0 0.0
    %341 = vmatprep.subr.mxu0 0.0
    %342 = vmatpush1.msra.mxu0 0.0
    %343 = vmatprep.subr.mxu0 0.0
    %344 = vmatpush1.msra.mxu0 0.0
    %345 = vmatprep.subr.mxu0 0.0
    %346 = vmatpush1.msra.mxu0 0.0
    %347 = vmatprep.subr.mxu0 0.0
    %348 = vmatpush1.msra.mxu0 0.0
    %349 = vmatprep.subr.mxu0 0.0
    %350 = vmatpush1.msra.mxu0 0.0
    %351 = vmatprep.subr.mxu0 0.0
    %352 = vmatpush1.msra.mxu0 0.0
    %353 = vmatprep.subr.mxu0 0.0
    %354 = vmatpush1.msra.mxu0 0.0
    %355 = vmatprep.subr.mxu0 0.0
    %356 = vmatpush1.msra.mxu0 0.0
    %357 = vmatprep.subr.mxu0 0.0
    %358 = vmatpush1.msra.mxu0 0.0
    %359 = vmatprep.subr.mxu0 0.0
    %360 = vmatpush1.msra.mxu0 0.0
    %361 = vmatprep.subr.mxu0 0.0
    %362 = vmatpush1.msra.mxu0 0.0
    %363 = vmatprep.subr.mxu0 0.0
    %364 = vmatpush1.msra.mxu0 0.0
    %365 = vmatprep.subr.mxu0 0.0
    %366 = vmatpush1.msra.mxu0 0.0
    %367 = vmatprep.subr.mxu0 0.0
    %368 = vmatpush1.msra.mxu0 0.0
    %369 = vmatprep.mubr.f32.mxu0 0.0
    %370 = vmatmul.mubr.f32.gmra.mrb[0].mxu0 %v161
    %v371 = vpop.f32.mrb[0].mxu0
    %v372 = vadd.f32 0.0, %v371
    %v373 = vpop.f32.mrb[0].mxu0
    %v374 = vadd.f32 0.0, %v373
    %375 = vdwg.mxu0
    %376 = vmatprep.subr.mxu0 %v103
    %377 = vmatpush1.msra.mxu0 %v102
    %378 = vmatprep.subr.mxu0 %v111
    %379 = vmatpush1.msra.mxu0 %v110
    %380 = vmatprep.subr.mxu0 %v119
    %381 = vmatpush1.msra.mxu0 %v118
    %382 = vmatprep.subr.mxu0 %v127
    %383 = vmatpush1.msra.mxu0 %v126
    %384 = vmatprep.subr.mxu0 %v135
    %385 = vmatpush1.msra.mxu0 %v134
    %386 = vmatprep.subr.mxu0 %v143
    %387 = vmatpush1.msra.mxu0 %v142
    %388 = vmatprep.subr.mxu0 %v151
    %389 = vmatpush1.msra.mxu0 %v150
    %390 = vmatprep.subr.mxu0 %v159
    %391 = vmatpush1.msra.mxu0 %v158
    %392 = vmatprep.subr.mxu0 0.0
    %393 = vmatpush1.msra.mxu0 0.0
    %394 = vmatprep.subr.mxu0 0.0
    %395 = vmatpush1.msra.mxu0 0.0
    %396 = vmatprep.subr.mxu0 0.0
    %397 = vmatpush1.msra.mxu0 0.0
    %398 = vmatprep.subr.mxu0 0.0
    %399 = vmatpush1.msra.mxu0 0.0
    %400 = vmatprep.subr.mxu0 0.0
    %401 = vmatpush1.msra.mxu0 0.0
    %402 = vmatprep.subr.mxu0 0.0
    %403 = vmatpush1.msra.mxu0 0.0
    %404 = vmatprep.subr.mxu0 0.0
    %405 = vmatpush1.msra.mxu0 0.0
    %406 = vmatprep.subr.mxu0 0.0
    %407 = vmatpush1.msra.mxu0 0.0
    %408 = vmatprep.subr.mxu0 0.0
    %409 = vmatpush1.msra.mxu0 0.0
    %410 = vmatprep.subr.mxu0 0.0
    %411 = vmatpush1.msra.mxu0 0.0
    %412 = vmatprep.subr.mxu0 0.0
    %413 = vmatpush1.msra.mxu0 0.0
    %414 = vmatprep.subr.mxu0 0.0
    %415 = vmatpush1.msra.mxu0 0.0
    %416 = vmatprep.subr.mxu0 0.0
    %417 = vmatpush1.msra.mxu0 0.0
    %418 = vmatprep.subr.mxu0 0.0
    %419 = vmatpush1.msra.mxu0 0.0
    %420 = vmatprep.subr.mxu0 0.0
    %421 = vmatpush1.msra.mxu0 0.0
    %422 = vmatprep.subr.mxu0 0.0
    %423 = vmatpush1.msra.mxu0 0.0
    %424 = vmatprep.subr.mxu0 0.0
    %425 = vmatpush1.msra.mxu0 0.0
    %426 = vmatprep.subr.mxu0 0.0
    %427 = vmatpush1.msra.mxu0 0.0
    %428 = vmatprep.subr.mxu0 0.0
    %429 = vmatpush1.msra.mxu0 0.0
    %430 = vmatprep.subr.mxu0 0.0
    %431 = vmatpush1.msra.mxu0 0.0
    %432 = vmatprep.subr.mxu0 0.0
    %433 = vmatpush1.msra.mxu0 0.0
    %434 = vmatprep.subr.mxu0 0.0
    %435 = vmatpush1.msra.mxu0 0.0
    %436 = vmatprep.subr.mxu0 0.0
    %437 = vmatpush1.msra.mxu0 0.0
    %438 = vmatprep.subr.mxu0 0.0
    %439 = vmatpush1.msra.mxu0 0.0
    %440 = vmatprep.mubr.f32.mxu0 0.0
    %441 = vmatmul.mubr.f32.gmra.mrb[0].mxu0 %v161
    %v442 = vpop.f32.mrb[0].mxu0
    %v443 = vadd.f32 0.0, %v442
    %v444 = vpop.f32.mrb[0].mxu0
    %v445 = vadd.f32 0.0, %v444
    %446 = vdwg.mxu0
    %v447 = vld [vmem:[#allocation7] sm:$0xff]
    %v448 = vld [vmem:[#allocation7 + $0x8] sm:$0xff]
    %v449 = vld [vmem:[#allocation7 + $0x10] sm:$0xff]
    %v450 = vld [vmem:[#allocation7 + $0x18] sm:$0xff]
    %v451 = vld [vmem:[#allocation7 + $0x20] sm:$0xff]
    %v452 = vld [vmem:[#allocation7 + $0x28] sm:$0xff]
    %v453 = vld [vmem:[#allocation7 + $0x30] sm:$0xff]
    %v454 = vld [vmem:[#allocation7 + $0x38] sm:$0xff]
    %v455 = vmul.f32 %v230, %v447
    %v456 = vmul.f32 %v232, %v448
    %v457 = vmul.f32 %v301, %v449
    %v458 = vmul.f32 %v303, %v450
    %v459 = vmul.f32 %v372, %v451
    %v460 = vmul.f32 %v374, %v452
    %v461 = vmul.f32 %v443, %v453
    %v462 = vmul.f32 %v445, %v454
    %v463 = vsub.f32 %v455, %v459
    %v464 = vsub.f32 %v456, %v460
    %v465 = vsub.f32 %v457, %v461
    %v466 = vsub.f32 %v458, %v462
    %v467 = vadd.f32 %v230, %v463
    %v468 = vadd.f32 %v232, %v464
    %v469 = vadd.f32 %v301, %v465
    %v470 = vadd.f32 %v303, %v466
    %v471 = vsub.f32 %v372, %v463
    %v472 = vsub.f32 %v374, %v464
    %v473 = vsub.f32 %v443, %v465
    %v474 = vsub.f32 %v445, %v466
    %v475 = vadd.f32 %v467, %v469
    %v476 = vadd.f32 %v468, %v470
    %v477 = vadd.f32 %v471, %v473
    %v478 = vadd.f32 %v472, %v474
    %v479 = vld [vmem:[#allocation8] sm:$0xff]
    %v480 = vld [vmem:[#allocation8 + $0x8] sm:$0xff]
    %v481 = vld [vmem:[#allocation8 + $0x10] sm:$0xff]
    %v482 = vld [vmem:[#allocation8 + $0x18] sm:$0xff]
    %v483 = vld [vmem:[#allocation8 + $0x20] sm:$0xff]
    %v484 = vld [vmem:[#allocation8 + $0x28] sm:$0xff]
    %v485 = vld [vmem:[#allocation8 + $0x30] sm:$0xff]
    %v486 = vld [vmem:[#allocation8 + $0x38] sm:$0xff]
    %v487 = vld [vmem:[#allocation8 + $0x40] sm:$0xff]
    %v488 = vld [vmem:[#allocation8 + $0x48] sm:$0xff]
    %v489 = vld [vmem:[#allocation8 + $0x50] sm:$0xff]
    %v490 = vld [vmem:[#allocation8 + $0x58] sm:$0xff]
    %v491 = vld [vmem:[#allocation8 + $0x60] sm:$0xff]
    %v492 = vld [vmem:[#allocation8 + $0x68] sm:$0xff]
    %v493 = vld [vmem:[#allocation8 + $0x70] sm:$0xff]
    %v494 = vld [vmem:[#allocation8 + $0x78] sm:$0xff]
    %v495 = vld [vmem:[#allocation8 + $0x80] sm:$0xff]
    %v496 = vld [vmem:[#allocation8 + $0x88] sm:$0xff]
    %v497 = vld [vmem:[#allocation8 + $0x90] sm:$0xff]
    %v498 = vld [vmem:[#allocation8 + $0x98] sm:$0xff]
    %v499 = vld [vmem:[#allocation8 + $0xa0] sm:$0xff]
    %v500 = vld [vmem:[#allocation8 + $0xa8] sm:$0xff]
    %v501 = vld [vmem:[#allocation8 + $0xb0] sm:$0xff]
    %v502 = vld [vmem:[#allocation8 + $0xb8] sm:$0xff]
    %v503 = vld [vmem:[#allocation8 + $0xc0] sm:$0xff]
    %v504 = vld [vmem:[#allocation8 + $0xc8] sm:$0xff]
    %v505 = vld [vmem:[#allocation8 + $0xd0] sm:$0xff]
    %v506 = vld [vmem:[#allocation8 + $0xd8] sm:$0xff]
    %v507 = vld [vmem:[#allocation8 + $0xe0] sm:$0xff]
    %v508 = vld [vmem:[#allocation8 + $0xe8] sm:$0xff]
    %v509 = vld [vmem:[#allocation8 + $0xf0] sm:$0xff]
    %v510 = vld [vmem:[#allocation8 + $0xf8] sm:$0xff]
    %v511 = vld [vmem:[#allocation8 + $0x100] sm:$0xff]
    %v512 = vld [vmem:[#allocation8 + $0x108] sm:$0xff]
    %v513 = vld [vmem:[#allocation8 + $0x110] sm:$0xff]
    %v514 = vld [vmem:[#allocation8 + $0x118] sm:$0xff]
    %v515 = vld [vmem:[#allocation8 + $0x120] sm:$0xff]
    %v516 = vld [vmem:[#allocation8 + $0x128] sm:$0xff]
    %v517 = vld [vmem:[#allocation8 + $0x130] sm:$0xff]
    %v518 = vld [vmem:[#allocation8 + $0x138] sm:$0xff]
    %v519 = vld [vmem:[#allocation8 + $0x140] sm:$0xff]
    %v520 = vld [vmem:[#allocation8 + $0x148] sm:$0xff]
    %v521 = vld [vmem:[#allocation8 + $0x150] sm:$0xff]
    %v522 = vld [vmem:[#allocation8 + $0x158] sm:$0xff]
    %v523 = vld [vmem:[#allocation8 + $0x160] sm:$0xff]
    %v524 = vld [vmem:[#allocation8 + $0x168] sm:$0xff]
    %v525 = vld [vmem:[#allocation8 + $0x170] sm:$0xff]
    %v526 = vld [vmem:[#allocation8 + $0x178] sm:$0xff]
    %v527 = vld [vmem:[#allocation8 + $0x180] sm:$0xff]
    %v528 = vld [vmem:[#allocation8 + $0x188] sm:$0xff]
    %v529 = vld [vmem:[#allocation8 + $0x190] sm:$0xff]
    %v530 = vld [vmem:[#allocation8 + $0x198] sm:$0xff]
    %v531 = vld [vmem:[#allocation8 + $0x1a0] sm:$0xff]
    %v532 = vld [vmem:[#allocation8 + $0x1a8] sm:$0xff]
    %v533 = vld [vmem:[#allocation8 + $0x1b0] sm:$0xff]
    %v534 = vld [vmem:[#allocation8 + $0x1b8] sm:$0xff]
    %v535 = vld [vmem:[#allocation8 + $0x1c0] sm:$0xff]
    %v536 = vld [vmem:[#allocation8 + $0x1c8] sm:$0xff]
    %v537 = vld [vmem:[#allocation8 + $0x1d0] sm:$0xff]
    %v538 = vld [vmem:[#allocation8 + $0x1d8] sm:$0xff]
    %v539 = vld [vmem:[#allocation8 + $0x1e0] sm:$0xff]
    %v540 = vld [vmem:[#allocation8 + $0x1e8] sm:$0xff]
    %v541 = vld [vmem:[#allocation8 + $0x1f0] sm:$0xff]
    %v542 = vld [vmem:[#allocation8 + $0x1f8] sm:$0xff]
    %v543 = vld [vmem:[%s4] sm:$0x1]
    %v545 = vlaneseq
    %v546 = vshrl.u32 %v545, 7
    %v547 = vsub.s32 0, %v546
    %v548 = vrot.slane %v543, %v547
    %550 = vmatprep.subr.mxu0 0.0
    %551 = vmatpush1.msra.mxu0 %v479
    %552 = vmatprep.subr.mxu0 0.0
    %553 = vmatpush1.msra.mxu0 %v480
    %554 = vmatprep.subr.mxu0 0.0
    %555 = vmatpush1.msra.mxu0 %v481
    %556 = vmatprep.subr.mxu0 0.0
    %557 = vmatpush1.msra.mxu0 %v482
    %558 = vmatprep.subr.mxu0 0.0
    %559 = vmatpush1.msra.mxu0 %v483
    %560 = vmatprep.subr.mxu0 0.0
    %561 = vmatpush1.msra.mxu0 %v484
    %562 = vmatprep.subr.mxu0 0.0
    %563 = vmatpush1.msra.mxu0 %v485
    %564 = vmatprep.subr.mxu0 0.0
    %565 = vmatpush1.msra.mxu0 %v486
    %566 = vmatprep.subr.mxu0 0.0
    %567 = vmatpush1.msra.mxu0 %v487
    %568 = vmatprep.subr.mxu0 0.0
    %569 = vmatpush1.msra.mxu0 %v488
    %570 = vmatprep.subr.mxu0 0.0
    %571 = vmatpush1.msra.mxu0 %v489
    %572 = vmatprep.subr.mxu0 0.0
    %573 = vmatpush1.msra.mxu0 %v490
    %574 = vmatprep.subr.mxu0 0.0
    %575 = vmatpush1.msra.mxu0 %v491
    %576 = vmatprep.subr.mxu0 0.0
    %577 = vmatpush1.msra.mxu0 %v492
    %578 = vmatprep.subr.mxu0 0.0
    %579 = vmatpush1.msra.mxu0 %v493
    %580 = vmatprep.subr.mxu0 0.0
    %581 = vmatpush1.msra.mxu0 %v494
    %582 = vmatprep.subr.mxu0 0.0
    %583 = vmatpush1.msra.mxu0 %v495
    %584 = vmatprep.subr.mxu0 0.0
    %585 = vmatpush1.msra.mxu0 %v496
    %586 = vmatprep.subr.mxu0 0.0
    %587 = vmatpush1.msra.mxu0 %v497
    %588 = vmatprep.subr.mxu0 0.0
    %589 = vmatpush1.msra.mxu0 %v498
    %590 = vmatprep.subr.mxu0 0.0
    %591 = vmatpush1.msra.mxu0 %v499
    %592 = vmatprep.subr.mxu0 0.0
    %593 = vmatpush1.msra.mxu0 %v500
    %594 = vmatprep.subr.mxu0 0.0
    %595 = vmatpush1.msra.mxu0 %v501
    %596 = vmatprep.subr.mxu0 0.0
    %597 = vmatpush1.msra.mxu0 %v502
    %598 = vmatprep.subr.mxu0 0.0
    %599 = vmatpush1.msra.mxu0 %v503
    %600 = vmatprep.subr.mxu0 0.0
    %601 = vmatpush1.msra.mxu0 %v504
    %602 = vmatprep.subr.mxu0 0.0
    %603 = vmatpush1.msra.mxu0 %v505
    %604 = vmatprep.subr.mxu0 0.0
    %605 = vmatpush1.msra.mxu0 %v506
    %606 = vmatprep.subr.mxu0 0.0
    %607 = vmatpush1.msra.mxu0 %v507
    %608 = vmatprep.subr.mxu0 0.0
    %609 = vmatpush1.msra.mxu0 %v508
    %610 = vmatprep.subr.mxu0 0.0
    %611 = vmatpush1.msra.mxu0 %v509
    %612 = vmatprep.subr.mxu0 0.0
    %613 = vmatpush1.msra.mxu0 %v510
    %614 = vmatprep.mubr.f32.mxu0 %v476
    %615 = vmatmul.mubr.f32.gmra.mrb[0].mxu0 %v475
    %v616 = vpop.f32.mrb[0].mxu0
    %v617 = vadd.f32 %v548, %v616
    %v618 = vpop.f32.mrb[0].mxu0
    %619 = vdwg.mxu0
    %620 = vmatprep.subr.mxu0 0.0
    %621 = vmatpush1.msra.mxu0 %v511
    %622 = vmatprep.subr.mxu0 0.0
    %623 = vmatpush1.msra.mxu0 %v512
    %624 = vmatprep.subr.mxu0 0.0
    %625 = vmatpush1.msra.mxu0 %v513
    %626 = vmatprep.subr.mxu0 0.0
    %627 = vmatpush1.msra.mxu0 %v514
    %628 = vmatprep.subr.mxu0 0.0
    %629 = vmatpush1.msra.mxu0 %v515
    %630 = vmatprep.subr.mxu0 0.0
    %631 = vmatpush1.msra.mxu0 %v516
    %632 = vmatprep.subr.mxu0 0.0
    %633 = vmatpush1.msra.mxu0 %v517
    %634 = vmatprep.subr.mxu0 0.0
    %635 = vmatpush1.msra.mxu0 %v518
    %636 = vmatprep.subr.mxu0 0.0
    %637 = vmatpush1.msra.mxu0 %v519
    %638 = vmatprep.subr.mxu0 0.0
    %639 = vmatpush1.msra.mxu0 %v520
    %640 = vmatprep.subr.mxu0 0.0
    %641 = vmatpush1.msra.mxu0 %v521
    %642 = vmatprep.subr.mxu0 0.0
    %643 = vmatpush1.msra.mxu0 %v522
    %644 = vmatprep.subr.mxu0 0.0
    %645 = vmatpush1.msra.mxu0 %v523
    %646 = vmatprep.subr.mxu0 0.0
    %647 = vmatpush1.msra.mxu0 %v524
    %648 = vmatprep.subr.mxu0 0.0
    %649 = vmatpush1.msra.mxu0 %v525
    %650 = vmatprep.subr.mxu0 0.0
    %651 = vmatpush1.msra.mxu0 %v526
    %652 = vmatprep.subr.mxu0 0.0
    %653 = vmatpush1.msra.mxu0 %v527
    %654 = vmatprep.subr.mxu0 0.0
    %655 = vmatpush1.msra.mxu0 %v528
    %656 = vmatprep.subr.mxu0 0.0
    %657 = vmatpush1.msra.mxu0 %v529
    %658 = vmatprep.subr.mxu0 0.0
    %659 = vmatpush1.msra.mxu0 %v530
    %660 = vmatprep.subr.mxu0 0.0
    %661 = vmatpush1.msra.mxu0 %v531
    %662 = vmatprep.subr.mxu0 0.0
    %663 = vmatpush1.msra.mxu0 %v532
    %664 = vmatprep.subr.mxu0 0.0
    %665 = vmatpush1.msra.mxu0 %v533
    %666 = vmatprep.subr.mxu0 0.0
    %667 = vmatpush1.msra.mxu0 %v534
    %668 = vmatprep.subr.mxu0 0.0
    %669 = vmatpush1.msra.mxu0 %v535
    %670 = vmatprep.subr.mxu0 0.0
    %671 = vmatpush1.msra.mxu0 %v536
    %672 = vmatprep.subr.mxu0 0.0
    %673 = vmatpush1.msra.mxu0 %v537
    %674 = vmatprep.subr.mxu0 0.0
    %675 = vmatpush1.msra.mxu0 %v538
    %676 = vmatprep.subr.mxu0 0.0
    %677 = vmatpush1.msra.mxu0 %v539
    %678 = vmatprep.subr.mxu0 0.0
    %679 = vmatpush1.msra.mxu0 %v540
    %680 = vmatprep.subr.mxu0 0.0
    %681 = vmatpush1.msra.mxu0 %v541
    %682 = vmatprep.subr.mxu0 0.0
    %683 = vmatpush1.msra.mxu0 %v542
    %684 = vmatprep.mubr.f32.mxu0 %v478
    %685 = vmatmul.mubr.f32.gmra.mrb[0].mxu0 %v477
    %v686 = vpop.f32.mrb[0].mxu0
    %v687 = vadd.f32 %v617, %v686
    %v688 = vpop.f32.mrb[0].mxu0
    %689 = vdwg.mxu0
    %v690 = vmul.f32 %v687, %v93
    %v691 = vadd.f32 %v690, %v78
    %692 = vst [vmem:[#allocation10] sm:$0xff] %v691
    // Predicated region
    $region38: #{tpu_custom_call.1} parent=1 // pred_check
      _
    $region39: #{tpu_custom_call.1} parent=1 // pred_check_branch
      %694 = sbr.rel (0) target = $region41
    $region40: #{tpu_custom_call.1} parent=1 // pred_region
      %s696 = ssub.s32 128, 128
      %697 = vsyncadd [#allocation4], %s696
      %s699 = sshll.u32 [#allocation10], 4
      %s700 = int_to_ptr.vmem [resolvable:$true] %s699
      %702 = dma.vmem_to_hbm [thread:$0]  %s700, 128, %s5, [#allocation4]
    $region41: #{tpu_custom_call.1} parent=1 // pred_fallthru
      _
    // Predicated region
    $region42: #{tpu_custom_call.1} parent=1 // pred_check
      _
    $region43: #{tpu_custom_call.1} parent=1 // pred_check_branch
      %704 = sbr.rel (0) target = $region45
    $region44: #{tpu_custom_call.1} parent=1 // pred_region
      %705 = dma.done [#allocation4], 128
    $region45: #{tpu_custom_call.1} parent=1 // pred_fallthru
      _
    %706 = vsyncpa [#allocation3], 1
    %707 = vsyncpa [#allocation6], 1
    %708 = vsyncpa [#allocation9], 1
    %709 = vsyncpa [#allocation4], 1

</llo_original>
